<compile_context>
chip_gen: v5e
topology: v5e:2x2
jax: 0.10.0
libtpu: 0.0.40
codegen_flags: <defaults>
</compile_context>

<pallas_src>
import jax
import jax.numpy as jnp
import numpy as np
from jax.experimental import pallas as pl
from jax.experimental.pallas import tpu as pltpu


def _rbf_tile_kernel(x1_ref, x2t_ref, inv_ref, var_ref, out_ref):
    x1 = x1_ref[...]                                                   # (TN, D) f32
    x2t = x2t_ref[...]                                                 # (D, TM) f32

    # Squared Euclidean distance via the matmul identity (MXU hot path):
    #   ||a - b||^2 = ||a||^2 + ||b||^2 - 2 a.b
    x1_sq = jnp.sum(x1 * x1, axis=-1, keepdims=True)                   # (TN, 1)
    x2_sq = jnp.sum(x2t * x2t, axis=0, keepdims=True)                  # (1, TM)
    cross = jnp.dot(x1, x2t, preferred_element_type=jnp.float32)       # (TN, TM) MXU
    dist = jnp.maximum(x1_sq + x2_sq - 2.0 * cross, 0.0)               # clamp fp error

    var = var_ref[0]                                                   # SMEM scalar
    # inv = -0.5 / lengthscale^2 (precomputed): one VPU mul + one EUP exp per element.
    out_ref[...] = var * jnp.exp(dist * inv_ref[...])


def _round_up(a, b):
    return (a + b - 1) // b * b


def rbf_kernel_pallas(x1, x2, variance, lengthscale):
    """x1: (N, D), x2: (M, D), variance: (1,), lengthscale: (input_dim,) with
    input_dim == M (required by the torch module's lengthscale broadcast)."""
    N, D = x1.shape
    M, D2 = x2.shape
    assert D == D2
    assert lengthscale.shape[0] == M, (
        "torch broadcast of lengthscale (input_dim,) against dist (N, M) "
        "requires input_dim == M")

    x1 = x1.astype(jnp.float32)
    x2 = x2.astype(jnp.float32)
    ls = lengthscale.astype(jnp.float32)
    var = variance.reshape(1).astype(jnp.float32)

    # Tile sizes: TM lane-dense multiple of 128, TN multiple of 8.
    TM = min(512, _round_up(M, 128))
    M_pad = _round_up(M, TM)
    TN = min(256, _round_up(N, 8))
    N_pad = _round_up(N, TN)

    if N_pad != N:
        x1 = jnp.pad(x1, ((0, N_pad - N), (0, 0)))
    if M_pad != M:
        x2 = jnp.pad(x2, ((0, M_pad - M), (0, 0)))
        ls = jnp.pad(ls, (0, M_pad - M), constant_values=1.0)

    # Pre-transpose x2 once in XLA -> (D, M_pad): lane-dense along M, the MXU's
    # preferred RHS layout; kills all in-kernel XLU transposes.
    x2t = x2.T
    # Precompute the per-column scale once; kernel only multiplies.
    inv = (-0.5 / (ls * ls)).reshape(1, M_pad)

    grid = (N_pad // TN, M_pad // TM)

    cost = pl.CostEstimate(
        flops=2 * N_pad * M_pad * D + 4 * N_pad * M_pad,
        transcendentals=N_pad * M_pad,
        bytes_accessed=4 * (N_pad * D + M_pad * D + M_pad + N_pad * M_pad),
    )

    out = pl.pallas_call(
        _rbf_tile_kernel,
        out_shape=jax.ShapeDtypeStruct((N_pad, M_pad), jnp.float32),
        grid_spec=pltpu.PrefetchScalarGridSpec(
            num_scalar_prefetch=0,
            grid=grid,
            in_specs=[
                pl.BlockSpec((TN, D), lambda i, j: (i, 0)),       # x1 row tile
                pl.BlockSpec((D, TM), lambda i, j: (0, j)),       # x2^T col tile
                pl.BlockSpec((1, TM), lambda i, j: (0, j)),       # -0.5/ls^2 col tile
                pl.BlockSpec(memory_space=pltpu.MemorySpace.SMEM),  # variance scalar
            ],
            out_specs=pl.BlockSpec((TN, TM), lambda i, j: (i, j)),
        ),
        compiler_params=pltpu.CompilerParams(
            dimension_semantics=("parallel", "parallel"),
            vmem_limit_bytes=32 * 1024 * 1024,
        ),
        cost_estimate=cost,
    )(x1, x2t, inv, var)

    return out[:N, :M]


def rbf_kernel_ref(x1, x2, variance, lengthscale):
    # Pure-JAX reference mirroring torch.cdist(x1, x2)**2 broadcasting rules.
    diff = x1[:, None, :] - x2[None, :, :]
    dist = jnp.sum(diff * diff, axis=-1)                      # (N, M)
    return variance[0] * jnp.exp(-0.5 * dist / lengthscale[None, :] ** 2)


if __name__ == "__main__":
    # Shapes consistent with the module: x1 (N, D), x2 (M, D).
    # input_dim = D = M so lengthscale (input_dim,) broadcasts against dist (N, M)
    # exactly as in the PyTorch forward. Non-tile-multiple M exercises padding.
    N, M, D = 48, 24, 24
    input_dim = D

    key = jax.random.PRNGKey(0)
    k1, k2 = jax.random.split(key)
    x1 = jax.random.normal(k1, (N, D), dtype=jnp.float32)
    x2 = jax.random.normal(k2, (M, D), dtype=jnp.float32)

    # Deterministic, non-trivial parameters (module default is ones).
    variance = jnp.array([1.5], dtype=jnp.float32)                        # (1,)
    lengthscale = 0.5 + 0.05 * jnp.arange(input_dim, dtype=jnp.float32)   # (input_dim,)

    cov = rbf_kernel_pallas(x1, x2, variance, lengthscale)
    cov = jax.block_until_ready(cov)

    ref = rbf_kernel_ref(x1, x2, variance, lengthscale)
    assert cov.shape == (N, M)
    np.testing.assert_allclose(np.asarray(cov), np.asarray(ref), rtol=1e-5, atol=1e-5)

    print("KERNEL_OK")
</pallas_src>

<mosaic_0001>
module attributes {stable_mosaic.version = 11 : i64} {
  func.func @_rbf_tile_kernel(%arg0: i32, %arg1: i32, %arg2: memref<48x24xf32, #tpu.memory_space<vmem>>, %arg3: memref<24x128xf32, #tpu.memory_space<vmem>>, %arg4: memref<1x128xf32, #tpu.memory_space<vmem>>, %arg5: memref<1xf32, #tpu.memory_space<smem>>, %arg6: memref<48x128xf32, #tpu.memory_space<vmem>>) attributes {dimension_semantics = [#tpu.dimension_semantics<parallel>, #tpu.dimension_semantics<parallel>], iteration_bounds = array<i64: 1, 1>, scalar_prefetch = 0 : i64, scratch_operands = 0 : i64, tpu.core_type = #tpu.core_type<tc>, window_params = [{transform_indices = @transform_0, window_bounds = array<i64: 48, 24>}, {transform_indices = @transform_1, window_bounds = array<i64: 24, 128>}, {transform_indices = @transform_2, window_bounds = array<i64: 1, 128>}, {transform_indices = @transform_3, window_bounds = array<i64: 1>}, {transform_indices = @transform_4, window_bounds = array<i64: 48, 128>}]} {
    %c0 = arith.constant 0 : index
    %c0_0 = arith.constant 0 : index
    %0 = vector.load %arg2[%c0, %c0_0] : memref<48x24xf32, #tpu.memory_space<vmem>>, vector<48x24xf32>
    %c0_1 = arith.constant 0 : index
    %c0_2 = arith.constant 0 : index
    %1 = vector.load %arg3[%c0_1, %c0_2] : memref<24x128xf32, #tpu.memory_space<vmem>>, vector<24x128xf32>
    %2 = arith.mulf %0, %0 : vector<48x24xf32>
    %cst = arith.constant dense<0.000000e+00> : vector<48xf32>
    %3 = vector.multi_reduction <add>, %2, %cst [1] : vector<48x24xf32> to vector<48xf32>
    %4 = vector.shape_cast %3 : vector<48xf32> to vector<48x1xf32>
    %5 = arith.mulf %1, %1 : vector<24x128xf32>
    %cst_3 = arith.constant dense<0.000000e+00> : vector<128xf32>
    %6 = vector.multi_reduction <add>, %5, %cst_3 [0] : vector<24x128xf32> to vector<128xf32>
    %7 = vector.shape_cast %6 : vector<128xf32> to vector<1x128xf32>
    %cst_4 = arith.constant dense<0.000000e+00> : vector<48x128xf32>
    %8 = tpu.matmul %0, %1, %cst_4 {dimension_numbers = #tpu.dot_dimension_numbers<[1], [0], [0], [1], [0, 0, 1, 1], [], []>} : vector<48x24xf32>, vector<24x128xf32>, vector<48x128xf32> -> vector<48x128xf32>
    %9 = vector.broadcast %4 : vector<48x1xf32> to vector<48x128xf32>
    %10 = vector.broadcast %7 : vector<1x128xf32> to vector<48x128xf32>
    %11 = arith.addf %9, %10 : vector<48x128xf32>
    %cst_5 = arith.constant 2.000000e+00 : f32
    %12 = vector.broadcast %cst_5 : f32 to vector<48x128xf32>
    %13 = arith.mulf %12, %8 : vector<48x128xf32>
    %14 = arith.subf %11, %13 : vector<48x128xf32>
    %cst_6 = arith.constant 0.000000e+00 : f32
    %15 = vector.broadcast %cst_6 : f32 to vector<48x128xf32>
    %16 = arith.maximumf %14, %15 : vector<48x128xf32>
    %c0_7 = arith.constant 0 : index
    %17 = memref.load %arg5[%c0_7] : memref<1xf32, #tpu.memory_space<smem>>
    %c0_8 = arith.constant 0 : index
    %c0_9 = arith.constant 0 : index
    %18 = vector.load %arg4[%c0_8, %c0_9] : memref<1x128xf32, #tpu.memory_space<vmem>>, vector<1x128xf32>
    %19 = vector.broadcast %18 : vector<1x128xf32> to vector<48x128xf32>
    %20 = arith.mulf %16, %19 : vector<48x128xf32>
    %21 = math.exp %20 : vector<48x128xf32>
    %22 = vector.broadcast %17 : f32 to vector<48x128xf32>
    %23 = arith.mulf %22, %21 : vector<48x128xf32>
    %c0_10 = arith.constant 0 : index
    %c0_11 = arith.constant 0 : index
    %24 = vector.load %arg6[%c0_10, %c0_11] : memref<48x128xf32, #tpu.memory_space<vmem>>, vector<48x128xf32>
    tpu.vector_store %arg6[%c0_10, %c0_11], %23 {strides = array<i32>} : memref<48x128xf32, #tpu.memory_space<vmem>>, vector<48x128xf32>,
    return
  }
  func.func @transform_0(%arg0: i32, %arg1: i32) -> (i32, i32) {
    %c0_i32 = arith.constant 0 : i32
    %c0_i32_0 = arith.constant 0 : i32
    return %arg0, %c0_i32 : i32, i32
  }
  func.func @transform_1(%arg0: i32, %arg1: i32) -> (i32, i32) {
    %c0_i32 = arith.constant 0 : i32
    %c0_i32_0 = arith.constant 0 : i32
    return %c0_i32, %arg1 : i32, i32
  }
  func.func @transform_2(%arg0: i32, %arg1: i32) -> (i32, i32) {
    %c0_i32 = arith.constant 0 : i32
    %c0_i32_0 = arith.constant 0 : i32
    return %c0_i32, %arg1 : i32, i32
  }
  func.func @transform_3(%arg0: i32, %arg1: i32) -> i32 {
    %c0_i32 = arith.constant 0 : i32
    %c0_i32_0 = arith.constant 0 : i32
    return %c0_i32 : i32
  }
  func.func @transform_4(%arg0: i32, %arg1: i32) -> (i32, i32) {
    %c0_i32 = arith.constant 0 : i32
    return %arg0, %arg1 : i32, i32
  }
}

</mosaic_0001>

<llo_original>
// kernel: tpu_custom_call.1
$region0: #{tpu_custom_call.1}
  #allocation0 [shape = 'u32[]', space=smem, size = 0x4, offset = 0x4, fixed_abs, tag = 'smem constant byte address 0x4 - core index']
  #allocation1 [shape = 'u32[72,128]{1,0:T(1,128)}', space=vmem, size = 0x9000, scoped, tag = 'internal scratch']
  #allocation2 [shape = 'f32[1]{0:T(128)S(6)}', space=smem, size = 0x200, scoped, tag = 'scoped memory for tpu_custom_call.1']
  %s0 = inlined_call_operand.vmem [shape: f32[48,24], index: 0, kind: input, shape index: {}]
  %s1 = inlined_call_operand.vmem [shape: f32[24,128], index: 1, kind: input, shape index: {}]
  %s2 = inlined_call_operand.vmem [shape: f32[1,128], index: 2, kind: input, shape index: {}]
  %s3 = inlined_call_operand.<no memory space> [shape: f32[1], index: 3, kind: input, shape index: {}]
  %s4 = inlined_call_operand.hbm [shape: f32[48,128], index: 4, kind: output, shape index: {}]
  %s5 = sld [smem:[#allocation0]]
  $region26: #{tpu_custom_call.1} parent=0
    _
  %s7 = ssub.s32 1, %s5
  %s8 = scalar_select 0, %s7, %s5
  %9 = sst [smem:[#allocation2]] %s3
  $region1: #{tpu_custom_call.1} parent=0
    #allocation3 [shape = 'u8[24576]{0}', space=vmem, size = 0x6000, scoped, tag = 'output window, operand 0, single buffered']
    #allocation4 [shape = 's32[1]{0}', space=sflag, size = 0x4, scoped, tag = 'scoped memory for tpu_custom_call.1']
    %10 = vsyncpa [#allocation4], 0
    // Predicated region
    $region2: #{tpu_custom_call.1} parent=1 // pred_check
      _
    $region3: #{tpu_custom_call.1} parent=1 // pred_check_branch
      %12 = sbr.rel (0) target = $region5
    $region4: #{tpu_custom_call.1} parent=1 // pred_region
      _
    $region5: #{tpu_custom_call.1} parent=1 // pred_fallthru
      _
    // Predicated region
    $region6: #{tpu_custom_call.1} parent=1 // pred_check
      _
    $region7: #{tpu_custom_call.1} parent=1 // pred_check_branch
      %14 = sbr.rel (0) target = $region9
    $region8: #{tpu_custom_call.1} parent=1 // pred_region
      _
    $region9: #{tpu_custom_call.1} parent=1 // pred_fallthru
      _
    // Predicated region
    $region10: #{tpu_custom_call.1} parent=1 // pred_check
      _
    $region11: #{tpu_custom_call.1} parent=1 // pred_check_branch
      %16 = sbr.rel (0) target = $region13
    $region12: #{tpu_custom_call.1} parent=1 // pred_region
      _
    $region13: #{tpu_custom_call.1} parent=1 // pred_fallthru
      _
    // Predicated region
    $region14: #{tpu_custom_call.1} parent=1 // pred_check
      _
    $region15: #{tpu_custom_call.1} parent=1 // pred_check_branch
      %18 = sbr.rel (0) target = $region17
    $region16: #{tpu_custom_call.1} parent=1 // pred_region
      _
    $region17: #{tpu_custom_call.1} parent=1 // pred_fallthru
      _
    %v19 = vld [vmem:[%s0] sm:$0xff]
    %v20 = vld [vmem:[%s0 + $0x8] sm:$0xff]
    %v21 = vld [vmem:[%s0 + $0x10] sm:$0xff]
    %v22 = vld [vmem:[%s0 + $0x18] sm:$0xff]
    %v23 = vld [vmem:[%s0 + $0x20] sm:$0xff]
    %v24 = vld [vmem:[%s0 + $0x28] sm:$0xff]
    %v25 = vld [vmem:[%s1] sm:$0xff]
    %v26 = vld [vmem:[%s1 + $0x8] sm:$0xff]
    %v27 = vld [vmem:[%s1 + $0x10] sm:$0xff]
    %v28 = vmul.f32 %v19, %v19
    %v29 = vmul.f32 %v20, %v20
    %v30 = vmul.f32 %v21, %v21
    %v31 = vmul.f32 %v22, %v22
    %v32 = vmul.f32 %v23, %v23
    %v33 = vmul.f32 %v24, %v24
    %vm34 = vcmask 195584
    %v35 = vsel %vm34, %v28, 0.0
    %36 = vadd.xlane.f32.xlu0 %v35
    %v37 = vpop.xlane.xlu0 %36
    %v38 = vsel %vm34, %v29, 0.0
    %39 = vadd.xlane.f32.xlu0 %v38
    %v40 = vpop.xlane.xlu0 %39
    %v41 = vsel %vm34, %v30, 0.0
    %42 = vadd.xlane.f32.xlu0 %v41
    %v43 = vpop.xlane.xlu0 %42
    %v44 = vsel %vm34, %v31, 0.0
    %45 = vadd.xlane.f32.xlu0 %v44
    %v46 = vpop.xlane.xlu0 %45
    %v47 = vsel %vm34, %v32, 0.0
    %48 = vadd.xlane.f32.xlu0 %v47
    %v49 = vpop.xlane.xlu0 %48
    %v50 = vsel %vm34, %v33, 0.0
    %51 = vadd.xlane.f32.xlu0 %v50
    %v52 = vpop.xlane.xlu0 %51
    %v53 = vmul.f32 %v25, %v25
    %v54 = vmul.f32 %v26, %v26
    %v55 = vmul.f32 %v27, %v27
    %v56 = vadd.f32 %v53, %v54
    %v57 = vadd.f32 %v56, %v55
    %v58 = vrot.slane %v57, 4
    %v59 = vadd.f32 %v57, %v58
    %v60 = vrot.slane %v59, 2
    %v61 = vadd.f32 %v59, %v60
    %v62 = vrot.slane %v61, 1
    %v63 = vadd.f32 %v61, %v62
    %v65 = vsel %vm34, %v19, 0
    %v68 = vsel %vm34, %v20, 0
    %v71 = vsel %vm34, %v21, 0
    %v74 = vsel %vm34, %v22, 0
    %v77 = vsel %vm34, %v23, 0
    %v80 = vsel %vm34, %v24, 0
    %82 = vmatpush.msra.mxu0 0.0
    %83 = vmatpush.msra.mxu0 0.0
    %84 = vmatpush.msra.mxu0 0.0
    %85 = vmatpush.msra.mxu0 0.0
    %86 = vmatpush.msra.mxu0 0.0
    %87 = vmatpush.msra.mxu0 0.0
    %88 = vmatpush.msra.mxu0 0.0
    %89 = vmatpush.msra.mxu0 0.0
    %90 = vmatpush.msra.mxu0 0.0
    %91 = vmatpush.msra.mxu0 0.0
    %92 = vmatpush.msra.mxu0 0.0
    %93 = vmatpush.msra.mxu0 0.0
    %94 = vmatpush.msra.mxu0 0.0
    %95 = vmatpush.msra.mxu0 %v27
    %96 = vmatpush.msra.mxu0 %v26
    %97 = vmatpush.msra.mxu0 %v25
    %98 = vmatmul.f32.gmra.mxu0 %v65
    %v99 = vpop.f32.mrf.mxu0
    %v100 = vadd.f32 0.0, %v99
    %101 = vmatmul.f32.gmra.mxu0 %v68
    %v102 = vpop.f32.mrf.mxu0
    %v103 = vadd.f32 0.0, %v102
    %104 = vmatmul.f32.gmra.mxu0 %v71
    %v105 = vpop.f32.mrf.mxu0
    %v106 = vadd.f32 0.0, %v105
    %107 = vmatmul.f32.gmra.mxu0 %v74
    %v108 = vpop.f32.mrf.mxu0
    %v109 = vadd.f32 0.0, %v108
    %110 = vmatmul.f32.gmra.mxu0 %v77
    %v111 = vpop.f32.mrf.mxu0
    %v112 = vadd.f32 0.0, %v111
    %113 = vmatmul.f32.gmra.mxu0 %v80
    %v114 = vpop.f32.mrf.mxu0
    %v115 = vadd.f32 0.0, %v114
    %116 = vdwg.mxu0
    %v117 = vadd.f32 %v37, %v63
    %v118 = vadd.f32 %v40, %v63
    %v119 = vadd.f32 %v43, %v63
    %v120 = vadd.f32 %v46, %v63
    %v121 = vadd.f32 %v49, %v63
    %v122 = vadd.f32 %v52, %v63
    %v123 = vmul.f32 %v100, 2.0
    %v124 = vmul.f32 %v103, 2.0
    %v125 = vmul.f32 %v106, 2.0
    %v126 = vmul.f32 %v109, 2.0
    %v127 = vmul.f32 %v112, 2.0
    %v128 = vmul.f32 %v115, 2.0
    %v129 = vsub.f32 %v117, %v123
    %v130 = vsub.f32 %v118, %v124
    %v131 = vsub.f32 %v119, %v125
    %v132 = vsub.f32 %v120, %v126
    %v133 = vsub.f32 %v121, %v127
    %v134 = vsub.f32 %v122, %v128
    %v135 = vmax.f32 %v129, 0.0
    %v136 = vmax.f32 %v130, 0.0
    %v137 = vmax.f32 %v131, 0.0
    %v138 = vmax.f32 %v132, 0.0
    %v139 = vmax.f32 %v133, 0.0
    %v140 = vmax.f32 %v134, 0.0
    %s141 = sld [smem:[#allocation2]]
    %v142 = vld [vmem:[%s2] sm:$0x1]
    %v144 = vperm.slane %v142, 0
    %v146 = vmul.f32 %v135, %v144
    %v147 = vmul.f32 %v136, %v144
    %v148 = vmul.f32 %v137, %v144
    %v149 = vmul.f32 %v138, %v144
    %v150 = vmul.f32 %v139, %v144
    %v151 = vmul.f32 %v140, %v144
    %v152 = vmul.f32 %v146, 1.442695
    %v153 = vpow.pop %v152
    %v154 = vmul.f32 %v147, 1.442695
    %v155 = vpow.pop %v154
    %v156 = vmul.f32 %v148, 1.442695
    %v157 = vpow.pop %v156
    %v158 = vmul.f32 %v149, 1.442695
    %v159 = vpow.pop %v158
    %v160 = vmul.f32 %v150, 1.442695
    %v161 = vpow.pop %v160
    %v162 = vmul.f32 %v151, 1.442695
    %v163 = vpow.pop %v162
    %v164 = vstv %s141
    %v165 = vmul.f32 %v164, %v153
    %v166 = vmul.f32 %v164, %v155
    %v167 = vmul.f32 %v164, %v157
    %v168 = vmul.f32 %v164, %v159
    %v169 = vmul.f32 %v164, %v161
    %v170 = vmul.f32 %v164, %v163
    %171 = vst [vmem:[#allocation3] sm:$0xff] %v165
    %172 = vst [vmem:[#allocation3 + $0x8] sm:$0xff] %v166
    %173 = vst [vmem:[#allocation3 + $0x10] sm:$0xff] %v167
    %174 = vst [vmem:[#allocation3 + $0x18] sm:$0xff] %v168
    %175 = vst [vmem:[#allocation3 + $0x20] sm:$0xff] %v169
    %176 = vst [vmem:[#allocation3 + $0x28] sm:$0xff] %v170
    // Predicated region
    $region18: #{tpu_custom_call.1} parent=1 // pred_check
      _
    $region19: #{tpu_custom_call.1} parent=1 // pred_check_branch
      %178 = sbr.rel (0) target = $region21
    $region20: #{tpu_custom_call.1} parent=1 // pred_region
      %180 = vsyncadd [#allocation4], 0
      %s181 = sshll.u32 [#allocation3], 4
      %s182 = int_to_ptr.vmem [resolvable:$true] %s181
      %s183 = sshll.u32 %s4, 4
      %s184 = int_to_ptr.hbm [resolvable:$true] %s183
      %189 = dma.vmem_to_hbm [thread:$0]  %s182, 768, %s184, [#allocation4], 128, 128, 8
    $region21: #{tpu_custom_call.1} parent=1 // pred_fallthru
      _
    // Predicated region
    $region22: #{tpu_custom_call.1} parent=1 // pred_check
      _
    $region23: #{tpu_custom_call.1} parent=1 // pred_check_branch
      %191 = sbr.rel (0) target = $region25
    $region24: #{tpu_custom_call.1} parent=1 // pred_region
      %193 = dma.done [#allocation4], 768
    $region25: #{tpu_custom_call.1} parent=1 // pred_fallthru
      _
    %194 = vsyncpa [#allocation4], 1

</llo_original>
